<compile_context>
chip_gen: v5e
topology: v5e:2x2
jax: 0.10.0
libtpu: 0.0.40
codegen_flags: <defaults>
</compile_context>

<pallas_src>
import functools

import jax
import jax.numpy as jnp
from jax.experimental import pallas as pl
from jax.experimental.pallas import tpu as pltpu


def _round_up(x, m):
    return ((x + m - 1) // m) * m


def _pick_lane_tile(n, rows, *, want_two=False, budget_bytes=8 << 20, live_slabs=10):
    """128-aligned lane tile for an (rows, n) f32 slab, VMEM-bounded; >=2 tiles if asked."""
    if n <= 128:
        return n                               # single full block (legal: equals array dim)
    cap = (budget_bytes // (rows * 4 * live_slabs)) // 128 * 128
    cap = max(128, min(2048, cap))             # review: >=512 already ~85% of HBM roofline
    tile = min(cap, _round_up(n, 128))
    if want_two and pl.cdiv(n, tile) < 2:      # give v7x's 2nd TensorCore work at b == 1
        tile = max(128, _round_up(pl.cdiv(n, 2), 128))
    return tile


# ----------------------------------------------------------------------------
# Stage 1: mean-first pooling (tiled over HW2 with tail mask) -> kv GEMV
#          outputs per batch:  kv = w_kv @ pooled  (2*c1, 1)
#                              out_vec = w_proj @ kv[c1:]  (c1, 1)   [fast path]
# ----------------------------------------------------------------------------
def _pool_kv_kernel(w_kv_ref, w_proj_ref, p_ref, kv_ref, vec_ref, acc_ref,
                    *, hw2, tile, c1):
    j = pl.program_id(1)

    @pl.when(j == 0)
    def _():
        acc_ref[...] = jnp.zeros_like(acc_ref)

    p = p_ref[...]                                                   # (c2, tile)
    if hw2 % tile:                                                   # mask the partial tail block
        col = jax.lax.broadcasted_iota(jnp.int32, p.shape, 1) + j * tile
        p = jnp.where(col < hw2, p, 0.0)
    acc_ref[...] += jnp.sum(p, axis=1, keepdims=True)                # (c2, 1)

    @pl.when(j == pl.num_programs(1) - 1)
    def _():
        pooled = acc_ref[...] * (1.0 / hw2)                          # AdaptiveAvgPool2d(1)
        kv = jnp.dot(w_kv_ref[...], pooled,
                     preferred_element_type=jnp.float32)             # (2*c1, 1)
        kv_ref[...] = kv
        v = kv[c1:, :]
        vec_ref[...] = jnp.dot(w_proj_ref[...], v,
                               preferred_element_type=jnp.float32)   # (c1, 1)


# ----------------------------------------------------------------------------
# Stage 2, fast path: softmax over size-1 key dim == 1  =>  output is the
# per-batch vector (w_proj @ v) broadcast over HW.  Pure lane-dense store.
# ----------------------------------------------------------------------------
def _broadcast_kernel(vec_ref, o_ref):
    o_ref[...] = jnp.broadcast_to(vec_ref[...], o_ref.shape).astype(o_ref.dtype)


# ----------------------------------------------------------------------------
# Stage 2, strict path: q conv (bf16) -> per-head size-1 attention -> value
# broadcast -> project_out.  Kept only for non-finite propagation fidelity.
# ----------------------------------------------------------------------------
def _fusion_strict_kernel(wq_ref, wproj_ref, f_ref, kv_ref, o_ref, *, c1, num_heads):
    cph = c1 // num_heads
    hwt = f_ref.shape[-1]

    # q only feeds the size-1-key softmax, so bf16 precision never reaches the
    # (finite-input) output; bf16 MXU + f32 accumulation.
    q = jnp.dot(wq_ref[...], f_ref[...].astype(wq_ref.dtype),
                preferred_element_type=jnp.float32)                  # (c1, hwt)

    kv = kv_ref[...]
    k = kv[:c1, :]
    v = kv[c1:, :]
    qk = q * k                                                       # (c1, hwt)

    # Per-head logits via sublane reshape-reduce (no head-selector matmuls).
    # Temperature is folded out: a finite scale never changes finite->non-finite
    # status and the size-1 softmax discards the magnitude anyway.
    if cph % 8 == 0:                                                 # (8,128)-aligned reshape
        logits = qk.reshape(num_heads, cph, hwt).sum(axis=1)         # (heads, hwt)
        p = jnp.exp(logits - logits)                                 # 1.0, or NaN if non-finite
        pfull = jnp.broadcast_to(p[:, None, :],
                                 (num_heads, cph, hwt)).reshape(c1, hwt)
    else:
        parts = []
        for hh in range(num_heads):
            s = qk[hh * cph:(hh + 1) * cph, :].sum(axis=0, keepdims=True)
            ps = jnp.exp(s - s)
            parts.append(jnp.broadcast_to(ps, (cph, hwt)))
        pfull = jnp.concatenate(parts, axis=0)                       # (c1, hwt)

    out_cf = pfull * v                                               # (c1, hwt)
    # project_out kept in f32 so finite outputs match the f32 reference exactly.
    o_ref[...] = jnp.dot(wproj_ref[...], out_cf,
                         preferred_element_type=jnp.float32).astype(o_ref.dtype)


# ----------------------------------------------------------------------------
# One-time parameter preprocessing (hoisted out of the forward pass)
# ----------------------------------------------------------------------------
def prepare_params(params, dim, num_heads):
    del num_heads  # temperature / head-selector are folded out entirely
    return {
        "w_q_bf16": params["w_q"].reshape(dim, dim).astype(jnp.bfloat16),
        "w_kv": params["w_kv"].reshape(2 * dim, -1).astype(jnp.float32),
        "w_proj": params["w_proj"].reshape(dim, dim).astype(jnp.float32),
    }


# ----------------------------------------------------------------------------
# Full forward
# ----------------------------------------------------------------------------
def low_freq_prompt_fusion(feature, prompt_feature, prep, num_heads,
                           *, strict_nonfinite=False):
    """feature: (b, dim, h, w); prompt_feature: (b, dim_bak, hp, wp) -> (b, dim, h, w)."""
    b, c1, h, w = feature.shape
    _, c2, hp, wp = prompt_feature.shape
    hw, hw2 = h * w, hp * wp

    feat = feature.reshape(b, c1, hw)             # free reshape (channel-first)
    prom = prompt_feature.reshape(b, c2, hw2)     # free reshape

    # ---- stage 1: pool first, then kv GEMV (and fused w_proj @ v vector) ----
    tile2 = _pick_lane_tile(hw2, c2, want_two=False)
    n2 = pl.cdiv(hw2, tile2)
    kv, out_vec = pl.pallas_call(
        functools.partial(_pool_kv_kernel, hw2=hw2, tile=tile2, c1=c1),
        out_shape=(jax.ShapeDtypeStruct((b, 2 * c1, 1), jnp.float32),
                   jax.ShapeDtypeStruct((b, c1, 1), jnp.float32)),
        grid=(b, n2),
        in_specs=[
            pl.BlockSpec((2 * c1, c2), lambda bi, j: (0, 0)),          # w_kv (resident)
            pl.BlockSpec((c1, c1), lambda bi, j: (0, 0)),              # w_proj (resident)
            pl.BlockSpec((None, c2, tile2), lambda bi, j: (bi, 0, j)),  # prompt tile
        ],
        out_specs=(pl.BlockSpec((None, 2 * c1, 1), lambda bi, j: (bi, 0, 0)),
                   pl.BlockSpec((None, c1, 1), lambda bi, j: (bi, 0, 0))),
        scratch_shapes=[pltpu.VMEM((c2, 1), jnp.float32)],             # pooling accumulator
        compiler_params=pltpu.CompilerParams(
            dimension_semantics=("parallel", "arbitrary")),
    )(prep["w_kv"], prep["w_proj"], prom)

    # ---- stage 2 ----
    hw_tile = _pick_lane_tile(hw, c1, want_two=True)
    n_tiles = pl.cdiv(hw, hw_tile)

    if not strict_nonfinite:
        # Fast path: size-1-key softmax == 1  =>  broadcast (w_proj @ v) over HW.
        out = pl.pallas_call(
            _broadcast_kernel,
            out_shape=jax.ShapeDtypeStruct((b, c1, hw), feature.dtype),
            grid=(b, n_tiles),
            in_specs=[pl.BlockSpec((None, c1, 1), lambda bi, ti: (bi, 0, 0))],
            out_specs=pl.BlockSpec((None, c1, hw_tile), lambda bi, ti: (bi, 0, ti)),
            compiler_params=pltpu.CompilerParams(
                dimension_semantics=("parallel", "parallel")),
        )(out_vec)
    else:
        kern = functools.partial(_fusion_strict_kernel, c1=c1, num_heads=num_heads)
        out = pl.pallas_call(
            kern,
            out_shape=jax.ShapeDtypeStruct((b, c1, hw), feature.dtype),
            grid=(b, n_tiles),
            in_specs=[
                pl.BlockSpec((c1, c1), lambda bi, ti: (0, 0)),               # w_q (bf16)
                pl.BlockSpec((c1, c1), lambda bi, ti: (0, 0)),               # w_proj (f32)
                pl.BlockSpec((None, c1, hw_tile), lambda bi, ti: (bi, 0, ti)),   # feature tile
                pl.BlockSpec((None, 2 * c1, 1), lambda bi, ti: (bi, 0, 0)),      # kv vector
            ],
            out_specs=pl.BlockSpec((None, c1, hw_tile), lambda bi, ti: (bi, 0, ti)),
            compiler_params=pltpu.CompilerParams(
                dimension_semantics=("parallel", "parallel")),
        )(prep["w_q_bf16"], prep["w_proj"], feat, kv)

    return out.reshape(b, c1, h, w)               # free reshape back to NCHW


# ----------------------------------------------------------------------------
# Pure-JAX reference replicating the literal PyTorch forward
# ----------------------------------------------------------------------------
def reference_forward(feature, prompt_feature, params, num_heads):
    b, c1, h, w = feature.shape
    hw = h * w
    cph = c1 // num_heads

    q = jnp.einsum("oc,bchw->bohw", params["w_q"], feature)             # (b,c1,h,w)
    query = q.reshape(b, hw, num_heads, cph)                            # literal torch reshape
    query = jnp.transpose(query, (0, 2, 1, 3))                          # (b,heads,hw,cph)

    pooled = jnp.mean(prompt_feature, axis=(2, 3))                      # AdaptiveAvgPool2d(1)
    kv = jnp.einsum("oc,bc->bo", params["w_kv"], pooled)                # (b, 2*c1)
    key = kv[:, :c1].reshape(b, num_heads, 1, cph)
    value = kv[:, c1:].reshape(b, num_heads, 1, cph)

    attn = jnp.einsum("bhsc,bhkc->bhsk", query, key) * params["temperature"][None]
    attn = jax.nn.softmax(attn, axis=-1)                                # size-1 dim -> ones
    out = jnp.einsum("bhsk,bhkc->bhsc", attn, value)                    # (b,heads,hw,cph)
    out = jnp.transpose(out, (0, 1, 3, 2)).reshape(b, c1, h, w)         # 'b head (h w) c -> b (head c) h w'
    return jnp.einsum("oc,bchw->bohw", params["w_proj"], out)


# ----------------------------------------------------------------------------
if __name__ == "__main__":
    dim, dim_bak, num_heads = 32, 64, 4      # bias=False instantiation
    b, h, w = 2, 16, 16

    key = jax.random.PRNGKey(0)
    k1, k2, k3, k4, k5 = jax.random.split(key, 5)
    params = {
        # nn.Conv2d(dim, dim, 1):        weight (dim, dim, 1, 1) -> (dim, dim)
        "w_q": 0.1 * jax.random.normal(k1, (dim, dim), jnp.float32),
        # nn.Conv2d(dim_bak, 2*dim, 1):  weight (2*dim, dim_bak, 1, 1) -> (2*dim, dim_bak)
        "w_kv": 0.1 * jax.random.normal(k2, (2 * dim, dim_bak), jnp.float32),
        # nn.Conv2d(dim, dim, 1):        weight (dim, dim, 1, 1) -> (dim, dim)
        "w_proj": 0.1 * jax.random.normal(k3, (dim, dim), jnp.float32),
        # nn.Parameter(torch.ones(num_heads, 1, 1)) (perturbed to be non-trivial)
        "temperature": jnp.linspace(0.5, 1.5, num_heads,
                                    dtype=jnp.float32).reshape(num_heads, 1, 1),
    }

    feature = jax.random.normal(k4, (b, dim, h, w), jnp.float32)
    prompt_feature = jax.random.normal(k5, (b, dim_bak, h, w), jnp.float32)

    prep = prepare_params(params, dim, num_heads)        # hoisted, done once
    ref = reference_forward(feature, prompt_feature, params, num_heads)

    out_fast = jax.block_until_ready(
        low_freq_prompt_fusion(feature, prompt_feature, prep, num_heads))
    out_strict = jax.block_until_ready(
        low_freq_prompt_fusion(feature, prompt_feature, prep, num_heads,
                               strict_nonfinite=True))

    assert out_fast.shape == (b, dim, h, w)
    assert out_strict.shape == (b, dim, h, w)
    for name, out in (("fast", out_fast), ("strict", out_strict)):
        err = float(jnp.max(jnp.abs(out - ref)))
        assert jnp.allclose(out, ref, atol=2e-4, rtol=2e-4), (name, err)

    print("KERNEL_OK")
</pallas_src>

<mosaic_0001>
module attributes {stable_mosaic.version = 11 : i64} {
  func.func @_pool_kv_kernel(%arg0: i32, %arg1: i32, %arg2: memref<64x64xf32, #tpu.memory_space<vmem>>, %arg3: memref<32x32xf32, #tpu.memory_space<vmem>>, %arg4: memref<1x64x256xf32, #tpu.memory_space<vmem>>, %arg5: memref<1x64x1xf32, #tpu.memory_space<vmem>>, %arg6: memref<1x32x1xf32, #tpu.memory_space<vmem>>, %arg7: memref<64x1xf32, #tpu.memory_space<vmem>>) attributes {dimension_semantics = [#tpu.dimension_semantics<parallel>, #tpu.dimension_semantics<arbitrary>], iteration_bounds = array<i64: 2, 1>, scalar_prefetch = 0 : i64, scratch_operands = 1 : i64, tpu.core_type = #tpu.core_type<tc>, window_params = [{pipeline_mode = #tpu.pipeline_mode<synchronous>, transform_indices = @transform_0, window_bounds = array<i64: 64, 64>}, {pipeline_mode = #tpu.pipeline_mode<synchronous>, transform_indices = @transform_1, window_bounds = array<i64: 32, 32>}, {transform_indices = @transform_2, window_bounds = array<i64: 1, 64, 256>}, {transform_indices = @transform_3, window_bounds = array<i64: 1, 64, 1>}, {transform_indices = @transform_4, window_bounds = array<i64: 1, 32, 1>}]} {
    %c0_i32 = arith.constant 0 : i32
    %0 = arith.cmpi eq, %arg1, %c0_i32 : i32
    %1 = arith.extui %0 : i1 to i32
    %c0_i32_0 = arith.constant 0 : i32
    %2 = arith.cmpi ne, %1, %c0_i32_0 : i32
    scf.if %2 {
      %cst_9 = arith.constant 0.000000e+00 : f32
      %13 = vector.broadcast %cst_9 : f32 to vector<64x1xf32>
      %c0_10 = arith.constant 0 : index
      %c0_11 = arith.constant 0 : index
      %14 = vector.load %arg7[%c0_10, %c0_11] : memref<64x1xf32, #tpu.memory_space<vmem>>, vector<64x1xf32>
      tpu.vector_store %arg7[%c0_10, %c0_11], %13 {strides = array<i32>} : memref<64x1xf32, #tpu.memory_space<vmem>>, vector<64x1xf32>,
    } else {
    }
    %c0 = arith.constant 0 : index
    %c0_1 = arith.constant 0 : index
    %c0_2 = arith.constant 0 : index
    %3 = vector.load %arg4[%c0, %c0_1, %c0_2] : memref<1x64x256xf32, #tpu.memory_space<vmem>>, vector<1x64x256xf32>
    %4 = vector.shape_cast %3 : vector<1x64x256xf32> to vector<64x256xf32>
    %c0_3 = arith.constant 0 : index
    %c0_4 = arith.constant 0 : index
    %5 = vector.load %arg7[%c0_3, %c0_4] : memref<64x1xf32, #tpu.memory_space<vmem>>, vector<64x1xf32>
    %cst = arith.constant dense<0.000000e+00> : vector<64xf32>
    %6 = vector.multi_reduction <add>, %4, %cst [1] : vector<64x256xf32> to vector<64xf32>
    %7 = vector.shape_cast %6 : vector<64xf32> to vector<64x1xf32>
    %8 = arith.addf %5, %7 : vector<64x1xf32>
    %c0_5 = arith.constant 0 : index
    %c0_6 = arith.constant 0 : index
    %9 = vector.load %arg7[%c0_5, %c0_6] : memref<64x1xf32, #tpu.memory_space<vmem>>, vector<64x1xf32>
    tpu.vector_store %arg7[%c0_5, %c0_6], %8 {strides = array<i32>} : memref<64x1xf32, #tpu.memory_space<vmem>>, vector<64x1xf32>,
    %c0_i32_7 = arith.constant 0 : i32
    %10 = arith.cmpi eq, %arg1, %c0_i32_7 : i32
    %11 = arith.extui %10 : i1 to i32
    %c0_i32_8 = arith.constant 0 : i32
    %12 = arith.cmpi ne, %11, %c0_i32_8 : i32
    scf.if %12 {
      %c0_9 = arith.constant 0 : index
      %c0_10 = arith.constant 0 : index
      %13 = vector.load %arg7[%c0_9, %c0_10] : memref<64x1xf32, #tpu.memory_space<vmem>>, vector<64x1xf32>
      %cst_11 = arith.constant 3.906250e-03 : f32
      %14 = vector.broadcast %cst_11 : f32 to vector<64x1xf32>
      %15 = arith.mulf %13, %14 : vector<64x1xf32>
      %c0_12 = arith.constant 0 : index
      %c0_13 = arith.constant 0 : index
      %16 = vector.load %arg2[%c0_12, %c0_13] : memref<64x64xf32, #tpu.memory_space<vmem>>, vector<64x64xf32>
      %cst_14 = arith.constant dense<0.000000e+00> : vector<64x1xf32>
      %17 = tpu.matmul %16, %15, %cst_14 {dimension_numbers = #tpu.dot_dimension_numbers<[1], [0], [0], [1], [0, 0, 1, 1], [], []>} : vector<64x64xf32>, vector<64x1xf32>, vector<64x1xf32> -> vector<64x1xf32>
      %c0_15 = arith.constant 0 : index
      %c0_16 = arith.constant 0 : index
      %c0_17 = arith.constant 0 : index
      %18 = vector.load %arg5[%c0_15, %c0_16, %c0_17] : memref<1x64x1xf32, #tpu.memory_space<vmem>>, vector<1x64x1xf32>
      %19 = vector.shape_cast %18 : vector<1x64x1xf32> to vector<64x1xf32>
      %20 = vector.shape_cast %17 : vector<64x1xf32> to vector<1x64x1xf32>
      tpu.vector_store %arg5[%c0_15, %c0_16, %c0_17], %20 {strides = array<i32>} : memref<1x64x1xf32, #tpu.memory_space<vmem>>, vector<1x64x1xf32>,
      %21 = vector.extract_strided_slice %17 {offsets = [32, 0], sizes = [32, 1], strides = [1, 1]} : vector<64x1xf32> to vector<32x1xf32>
      %c0_18 = arith.constant 0 : index
      %c0_19 = arith.constant 0 : index
      %22 = vector.load %arg3[%c0_18, %c0_19] : memref<32x32xf32, #tpu.memory_space<vmem>>, vector<32x32xf32>
      %cst_20 = arith.constant dense<0.000000e+00> : vector<32x1xf32>
      %23 = tpu.matmul %22, %21, %cst_20 {dimension_numbers = #tpu.dot_dimension_numbers<[1], [0], [0], [1], [0, 0, 1, 1], [], []>} : vector<32x32xf32>, vector<32x1xf32>, vector<32x1xf32> -> vector<32x1xf32>
      %c0_21 = arith.constant 0 : index
      %c0_22 = arith.constant 0 : index
      %c0_23 = arith.constant 0 : index
      %24 = vector.load %arg6[%c0_21, %c0_22, %c0_23] : memref<1x32x1xf32, #tpu.memory_space<vmem>>, vector<1x32x1xf32>
      %25 = vector.shape_cast %24 : vector<1x32x1xf32> to vector<32x1xf32>
      %26 = vector.shape_cast %23 : vector<32x1xf32> to vector<1x32x1xf32>
      tpu.vector_store %arg6[%c0_21, %c0_22, %c0_23], %26 {strides = array<i32>} : memref<1x32x1xf32, #tpu.memory_space<vmem>>, vector<1x32x1xf32>,
    } else {
    }
    return
  }
  func.func @transform_0(%arg0: i32, %arg1: i32) -> (i32, i32) {
    %c0_i32 = arith.constant 0 : i32
    %c0_i32_0 = arith.constant 0 : i32
    %c0_i32_1 = arith.constant 0 : i32
    return %c0_i32, %c0_i32_0 : i32, i32
  }
  func.func @transform_1(%arg0: i32, %arg1: i32) -> (i32, i32) {
    %c0_i32 = arith.constant 0 : i32
    %c0_i32_0 = arith.constant 0 : i32
    %c0_i32_1 = arith.constant 0 : i32
    return %c0_i32, %c0_i32_0 : i32, i32
  }
  func.func @transform_2(%arg0: i32, %arg1: i32) -> (i32, i32, i32) {
    %c0_i32 = arith.constant 0 : i32
    %c0_i32_0 = arith.constant 0 : i32
    return %arg0, %c0_i32, %arg1 : i32, i32, i32
  }
  func.func @transform_3(%arg0: i32, %arg1: i32) -> (i32, i32, i32) {
    %c0_i32 = arith.constant 0 : i32
    %c0_i32_0 = arith.constant 0 : i32
    %c0_i32_1 = arith.constant 0 : i32
    return %arg0, %c0_i32, %c0_i32_0 : i32, i32, i32
  }
  func.func @transform_4(%arg0: i32, %arg1: i32) -> (i32, i32, i32) {
    %c0_i32 = arith.constant 0 : i32
    %c0_i32_0 = arith.constant 0 : i32
    %c0_i32_1 = arith.constant 0 : i32
    return %arg0, %c0_i32, %c0_i32_0 : i32, i32, i32
  }
}

</mosaic_0001>

<llo_original>
// kernel: tpu_custom_call.1
$region0: #{tpu_custom_call.1}
  #allocation0 [shape = 'u32[]', space=smem, size = 0x4, offset = 0x4, fixed_abs, tag = 'smem constant byte address 0x4 - core index']
  #allocation1 [shape = 'u32[72,128]{1,0:T(1,128)}', space=vmem, size = 0x9000, scoped, tag = 'internal scratch']
  #allocation2 [shape = 'f32[64,1]{1,0:T(8,128)}', space=vmem, size = 0x8000, scoped, tag = 'scratch operand']
  %s0 = inlined_call_operand.hbm [shape: f32[64,64], index: 0, kind: input, shape index: {}]
  %s1 = inlined_call_operand.hbm [shape: f32[32,32], index: 1, kind: input, shape index: {}]
  %s2 = inlined_call_operand.hbm [shape: f32[2,64,256], index: 2, kind: input, shape index: {}]
  %s3 = inlined_call_operand.vmem [shape: f32[2,64,1], index: 3, kind: output, shape index: {0}]
  %s4 = inlined_call_operand.vmem [shape: f32[2,32,1], index: 4, kind: output, shape index: {1}]
  %5 = xla_tuple %s3, %s4
  %s6 = sld [smem:[#allocation0]]
  $region73: #{tpu_custom_call.1} parent=0
    _
  %s8 = ssub.s32 1, %s6
  %s9 = scalar_select 0, %s8, %s6
  $region1: #{tpu_custom_call.1} parent=0
    #allocation3 [shape = 'u8[32768]{0}', space=vmem, size = 0x8000, scoped, tag = 'input window, operand 0, single buffered']
    #allocation4 [shape = 's32[2]{0}', space=sflag, size = 0x8, scoped, tag = 'scoped memory for tpu_custom_call.1']
    #allocation5 [shape = 'u8[16384]{0}', space=vmem, size = 0x4000, scoped, tag = 'input window, operand 1, single buffered']
    #allocation6 [shape = 's32[1]{0}', space=sflag, size = 0x4, scoped, tag = 'scoped memory for tpu_custom_call.1']
    #allocation7 [shape = 'u8[131072]{0}', space=vmem, size = 0x20000, scoped, tag = 'input window, operand 2']
    %10 = vsyncpa [#allocation4], 0
    %11 = vsyncpa [#allocation6], 0
    loop: start=0, step=1, limit=4
    $region2: #{tpu_custom_call.1} parent=1 // loop_pre_header
      _
    $region3: #{tpu_custom_call.1} parent=1 // loop_header
      %s13 = sphi 0, %s17
      %p14 = scmp.ge.s32.totalorder %s13, 4
      %s20 = sphi 0, %s32
      %s21 = sphi 0, %s28
      %s22 = sphi 0, %s20
      %s23 = sphi 0, %s21
      %s24 = sphi 0, %s22
      %s25 = sphi 0, %s23
      %s33 = sphi 0, %s33
      %s35 = sphi 0, %s33
      %s36 = sphi 0, %s35
      %s50 = sphi 0, %s36
      %s54 = sphi 0, %s54
      %s56 = sphi 0, %s54
      %s57 = sphi 0, %s56
      %s71 = sphi 0, %s57
      %s79 = sphi 0, %s81
      %s82 = sphi 0, %s79
      %s83 = sphi 0, %s82
      %s99 = sphi 0, %s83
      %s105 = sphi 0, %s107
      %s108 = sphi 0, %s105
      %s109 = sphi 0, %s108
      %s125 = sphi 0, %s109
      %s131 = sphi 0, %s133
      %s134 = sphi 0, %s131
      %s135 = sphi 0, %s134
      %s151 = sphi 0, %s135
    $region4: #{tpu_custom_call.1} parent=1 // loop_header_branch
      %16 = sbr.rel (%p14) target = $region8
    $region5: #{tpu_custom_call.1} parent=1 // loop_body
      %s18 = ssub.s32 %s13, 1
      %s19 = ssub.s32 %s13, 2
      %s26 = sadd.s32 1, %s21
      %p27 = scmp.ge.s32.totalorder %s26, 1
      %s28 = scalar_select %p27, 0, %s26
      %s29 = sadd.s32 1, %s20
      %s30 = scalar_select %p27, %s29, %s20
      %p31 = scmp.ge.s32.totalorder %s30, 2
      %s32 = scalar_select %p31, 0, %s30
      %s34 = sadd.s32 %s33, 1
      %p37 = scmp.eq.s32.totalorder %s13, 1
      %p38 = scmp.ne.s32.totalorder %s33, %s35
      %p39 = scmp.eq.s32.totalorder %s13, 0
      %p40 = por %p38, %p39
      %p41 = scmp.ne.s32.totalorder %s33, %s35
      %p42 = scmp.eq.s32.totalorder %s18, 1
      %p43 = por %p41, %p42
      %p44 = scmp.ne.s32.totalorder %s35, %s36
      %p45 = scmp.eq.s32.totalorder %s18, 0
      %p46 = por %p44, %p45
      %p47 = scmp.ne.s32.totalorder %s35, %s36
      %p48 = scmp.eq.s32.totalorder %s19, 1
      %p49 = por %p47, %p48
      %p51 = scmp.ne.s32.totalorder %s36, %s50
      %p52 = scmp.eq.s32.totalorder %s19, 0
      %p53 = por %p51, %p52
      %s55 = sadd.s32 %s54, 1
      %p58 = scmp.eq.s32.totalorder %s13, 1
      %p59 = scmp.ne.s32.totalorder %s54, %s56
      %p60 = scmp.eq.s32.totalorder %s13, 0
      %p61 = por %p59, %p60
      %p62 = scmp.ne.s32.totalorder %s54, %s56
      %p63 = scmp.eq.s32.totalorder %s18, 1
      %p64 = por %p62, %p63
      %p65 = scmp.ne.s32.totalorder %s56, %s57
      %p66 = scmp.eq.s32.totalorder %s18, 0
      %p67 = por %p65, %p66
      %p68 = scmp.ne.s32.totalorder %s56, %s57
      %p69 = scmp.eq.s32.totalorder %s19, 1
      %p70 = por %p68, %p69
      %p72 = scmp.ne.s32.totalorder %s57, %s71
      %p73 = scmp.eq.s32.totalorder %s19, 0
      %p74 = por %p72, %p73
      %s75 = ssub.s32 %s20, %s32
      %s76 = ssub.s32 %s21, %s28
      %s77 = sor.u32 %s75, %s76
      %p78 = scmp.eq.s32.totalorder %s77, 0
      %s80 = sadd.s32 %s79, 1
      %s81 = scalar_select %p78, %s79, %s80
      %p84 = pneg %p78
      %p85 = scmp.eq.s32.totalorder %s13, 1
      %p86 = por %p84, %p85
      %p87 = scmp.ne.s32.totalorder %s79, %s82
      %p88 = scmp.eq.s32.totalorder %s13, 0
      %p89 = por %p87, %p88
      %p90 = scmp.ne.s32.totalorder %s79, %s82
      %p91 = scmp.eq.s32.totalorder %s18, 1
      %p92 = por %p90, %p91
      %p93 = scmp.ne.s32.totalorder %s82, %s83
      %p94 = scmp.eq.s32.totalorder %s18, 0
      %p95 = por %p93, %p94
      %p96 = scmp.ne.s32.totalorder %s82, %s83
      %p97 = scmp.eq.s32.totalorder %s19, 1
      %p98 = por %p96, %p97
      %p100 = scmp.ne.s32.totalorder %s83, %s99
      %p101 = scmp.eq.s32.totalorder %s19, 0
      %p102 = por %p100, %p101
      %s103 = ssub.s32 %s20, %s32
      %p104 = scmp.eq.s32.totalorder %s103, 0
      %s106 = sadd.s32 %s105, 1
      %s107 = scalar_select %p104, %s105, %s106
      %p110 = pneg %p104
      %p111 = scmp.eq.s32.totalorder %s13, 1
      %p112 = por %p110, %p111
      %p113 = scmp.ne.s32.totalorder %s105, %s108
      %p114 = scmp.eq.s32.totalorder %s13, 0
      %p115 = por %p113, %p114
      %p116 = scmp.ne.s32.totalorder %s105, %s108
      %p117 = scmp.eq.s32.totalorder %s18, 1
      %p118 = por %p116, %p117
      %p119 = scmp.ne.s32.totalorder %s108, %s109
      %p120 = scmp.eq.s32.totalorder %s18, 0
      %p121 = por %p119, %p120
      %p122 = scmp.ne.s32.totalorder %s108, %s109
      %p123 = scmp.eq.s32.totalorder %s19, 1
      %p124 = por %p122, %p123
      %p126 = scmp.ne.s32.totalorder %s109, %s125
      %p127 = scmp.eq.s32.totalorder %s19, 0
      %p128 = por %p126, %p127
      %s129 = ssub.s32 %s20, %s32
      %p130 = scmp.eq.s32.totalorder %s129, 0
      %s132 = sadd.s32 %s131, 1
      %s133 = scalar_select %p130, %s131, %s132
      %p136 = pneg %p130
      %p137 = scmp.eq.s32.totalorder %s13, 1
      %p138 = por %p136, %p137
      %p139 = scmp.ne.s32.totalorder %s131, %s134
      %p140 = scmp.eq.s32.totalorder %s13, 0
      %p141 = por %p139, %p140
      %p142 = scmp.ne.s32.totalorder %s131, %s134
      %p143 = scmp.eq.s32.totalorder %s18, 1
      %p144 = por %p142, %p143
      %p145 = scmp.ne.s32.totalorder %s134, %s135
      %p146 = scmp.eq.s32.totalorder %s18, 0
      %p147 = por %p145, %p146
      %p148 = scmp.ne.s32.totalorder %s134, %s135
      %p149 = scmp.eq.s32.totalorder %s19, 1
      %p150 = por %p148, %p149
      %p152 = scmp.ne.s32.totalorder %s135, %s151
      %p153 = scmp.eq.s32.totalorder %s19, 0
      %p154 = por %p152, %p153
      %p155 = scmp.le.s32.totalorder 1, %s13
      %p156 = scmp.lt.s32.totalorder %s13, 3
      %p157 = pnand %p155, %p156
      %p158 = pneg %p157
      // Predicated region
      $region9: #{tpu_custom_call.1} parent=5 // pred_check
        _
      $region10: #{tpu_custom_call.1} parent=5 // pred_check_branch
        %160 = sbr.rel (%p157) target = $region12
      $region11: #{tpu_custom_call.1} parent=5 // pred_region
        %s161 = ssub.s32 %s13, 1
        // Predicated region
        $region13: #{tpu_custom_call.1} parent=11 // pred_check
          %p162 = pneg %p46
        $region14: #{tpu_custom_call.1} parent=11 // pred_check_branch
          %164 = sbr.rel (%p162) target = $region16
        $region15: #{tpu_custom_call.1} parent=11 // pred_region
          %166 = vsyncadd [#allocation4], 0
          %s167 = sshll.u32 %s0, 4
          %s168 = int_to_ptr.hbm [resolvable:$true] %s167
          %s169 = sshll.u32 [#allocation3], 4
          %s170 = int_to_ptr.vmem [resolvable:$true] %s169
          %175 = dma.hbm_to_vmem [thread:$0]  %s168, 1024, %s170, [#allocation4], 128, 128, 8
        $region16: #{tpu_custom_call.1} parent=11 // pred_fallthru
          _
        // Predicated region
        $region17: #{tpu_custom_call.1} parent=11 // pred_check
          %p176 = pneg %p67
        $region18: #{tpu_custom_call.1} parent=11 // pred_check_branch
          %178 = sbr.rel (%p176) target = $region20
        $region19: #{tpu_custom_call.1} parent=11 // pred_region
          %180 = vsyncadd [#allocation6], 0
          %s181 = sshll.u32 %s1, 4
          %s182 = int_to_ptr.hbm [resolvable:$true] %s181
          %s183 = sshll.u32 [#allocation5], 4
          %s184 = int_to_ptr.vmem [resolvable:$true] %s183
          %189 = dma.hbm_to_vmem [thread:$0]  %s182, 512, %s184, [#allocation6], 128, 128, 8
        $region20: #{tpu_custom_call.1} parent=11 // pred_fallthru
          _
      $region12: #{tpu_custom_call.1} parent=5 // pred_fallthru
        _
      %p190 = scmp.lt.s32.totalorder %s13, 2
      // Predicated region
      $region21: #{tpu_custom_call.1} parent=5 // pred_check
        %p191 = pneg %p190
      $region22: #{tpu_custom_call.1} parent=5 // pred_check_branch
        %193 = sbr.rel (%p191) target = $region24
      $region23: #{tpu_custom_call.1} parent=5 // pred_region
        // Predicated region
        $region25: #{tpu_custom_call.1} parent=23 // pred_check
          %p194 = pneg %p89
        $region26: #{tpu_custom_call.1} parent=23 // pred_check_branch
          %196 = sbr.rel (%p194) target = $region28
        $region27: #{tpu_custom_call.1} parent=23 // pred_region
          %s197 = sand.u32 %s13, 1
          %s198 = scalar_lea.sflag [#allocation4], %s197
          %s199 = sand.u32 %s79, 1
          %s200 = smul.addr %s199, 128
          %s201 = scalar_lea.vmem [#allocation7], %s200
          %s202 = smul.u32 2, %s21
          %204 = vsyncadd %s198, 0
          %s205 = smul.addr %s20, 16
          %s206 = sadd.s32 %s202, %s205
          %s207 = smul.addr %s206, 8
          %s208 = scalar_lea.hbm %s2, %s207
          %s209 = sshll.u32 %s208, 4
          %s210 = int_to_ptr.hbm [resolvable:$true] %s209
          %s211 = sshll.u32 %s201, 4
          %s212 = int_to_ptr.vmem [resolvable:$true] %s211
          %217 = dma.hbm_to_vmem [thread:$0]  %s210, 2048, %s212, %s198, 256, 256, 16
        $region28: #{tpu_custom_call.1} parent=23 // pred_fallthru
          _
      $region24: #{tpu_custom_call.1} parent=5 // pred_fallthru
        _
      %p218 = scmp.le.s32.totalorder 1, %s13
      %p219 = scmp.lt.s32.totalorder %s13, 3
      %p220 = pnand %p218, %p219
      %p221 = pneg %p220
      // Predicated region
      $region29: #{tpu_custom_call.1} parent=5 // pred_check
        _
      $region30: #{tpu_custom_call.1} parent=5 // pred_check_branch
        %223 = sbr.rel (%p220) target = $region32
      $region31: #{tpu_custom_call.1} parent=5 // pred_region
        %s224 = ssub.s32 %s13, 1
        // Predicated region
        $region33: #{tpu_custom_call.1} parent=31 // pred_check
          %p225 = pneg %p46
        $region34: #{tpu_custom_call.1} parent=31 // pred_check_branch
          %227 = sbr.rel (%p225) target = $region36
        $region35: #{tpu_custom_call.1} parent=31 // pred_region
          %229 = dma.done [#allocation4], 1024
        $region36: #{tpu_custom_call.1} parent=31 // pred_fallthru
          _
        // Predicated region
        $region37: #{tpu_custom_call.1} parent=31 // pred_check
          %p230 = pneg %p67
        $region38: #{tpu_custom_call.1} parent=31 // pred_check_branch
          %232 = sbr.rel (%p230) target = $region40
        $region39: #{tpu_custom_call.1} parent=31 // pred_region
          %234 = dma.done [#allocation6], 512
        $region40: #{tpu_custom_call.1} parent=31 // pred_fallthru
          _
        %s235 = sand.u32 %s18, 1
        %s236 = scalar_lea.sflag [#allocation4], %s235
        %s237 = sand.u32 %s82, 1
        %s238 = smul.addr %s237, 128
        %s239 = scalar_lea.vmem [#allocation7], %s238
        // Predicated region
        $region41: #{tpu_custom_call.1} parent=31 // pred_check
          %p240 = pneg %p95
        $region42: #{tpu_custom_call.1} parent=31 // pred_check_branch
          %242 = sbr.rel (%p240) target = $region44
        $region43: #{tpu_custom_call.1} parent=31 // pred_region
          %244 = dma.done %s236, 2048
        $region44: #{tpu_custom_call.1} parent=31 // pred_fallthru
          _
        %p245 = pneg %p46
        %p246 = pneg %p43
        %p247 = pneg %p67
        %p248 = pneg %p64
        %s249 = sand.u32 %s18, 1
        %s250 = scalar_lea.sflag [#allocation4], %s249
        %s251 = sand.u32 %s82, 1
        %s252 = smul.addr %s251, 128
        %s253 = scalar_lea.vmem [#allocation7], %s252
        %p254 = pneg %p95
        %p255 = pneg %p92
        %p256 = pneg %p121
        %p257 = pneg %p118
        %p258 = scmp.lt.s32.totalorder %s22, 1
        %s259 = scalar_select %p258, %s22, 1
        %s260 = smul.addr %s259, 8
        %s261 = smul.addr %s260, 8
        %s262 = scalar_lea.vmem %s3, %s261
        %p263 = pneg %p147
        %p264 = pneg %p144
        %p265 = scmp.lt.s32.totalorder %s22, 1
        %s266 = scalar_select %p265, %s22, 1
        %s267 = smul.addr %s266, 4
        %s268 = smul.addr %s267, 8
        %s269 = scalar_lea.vmem %s4, %s268
        %s270 = smul.u32 2, %s23
        %p271 = scmp.lt.s32.totalorder %s22, 1
        %s272 = scalar_select %p271, %s22, 1
        %s273 = smul.addr %s272, 8
        %s274 = smul.addr %s273, 8
        %s275 = scalar_lea.vmem %s3, %s274
        %p276 = scmp.lt.s32.totalorder %s22, 1
        %s277 = scalar_select %p276, %s22, 1
        %s278 = smul.addr %s277, 4
        %s279 = smul.addr %s278, 8
        %s280 = scalar_lea.vmem %s4, %s279
        %p281 = scmp.eq.s32.totalorder %s23, 0
        // Predicated region
        $region45: #{tpu_custom_call.1} parent=31 // pred_check
          %p282 = pneg %p281
        $region46: #{tpu_custom_call.1} parent=31 // pred_check_branch
          %284 = sbr.rel (%p282) target = $region48
        $region47: #{tpu_custom_call.1} parent=31 // pred_region
          %vm285 = vcmask 7168
          %286 = vst.msk [vmem:[#allocation2] sm:$0xff] %vm285, 0.0
          %287 = vst.msk [vmem:[#allocation2 + $0x8] sm:$0xff] %vm285, 0.0
          %288 = vst.msk [vmem:[#allocation2 + $0x10] sm:$0xff] %vm285, 0.0
          %289 = vst.msk [vmem:[#allocation2 + $0x18] sm:$0xff] %vm285, 0.0
          %290 = vst.msk [vmem:[#allocation2 + $0x20] sm:$0xff] %vm285, 0.0
          %291 = vst.msk [vmem:[#allocation2 + $0x28] sm:$0xff] %vm285, 0.0
          %292 = vst.msk [vmem:[#allocation2 + $0x30] sm:$0xff] %vm285, 0.0
          %293 = vst.msk [vmem:[#allocation2 + $0x38] sm:$0xff] %vm285, 0.0
        $region48: #{tpu_custom_call.1} parent=31 // pred_fallthru
          _
        %v294 = vld [vmem:[%s239] sm:$0xff]
        %v295 = vld [vmem:[%s239 + $0x8] sm:$0xff]
        %v296 = vld [vmem:[%s239 + $0x10] sm:$0xff]
        %v297 = vld [vmem:[%s239 + $0x18] sm:$0xff]
        %v298 = vld [vmem:[%s239 + $0x20] sm:$0xff]
        %v299 = vld [vmem:[%s239 + $0x28] sm:$0xff]
        %v300 = vld [vmem:[%s239 + $0x30] sm:$0xff]
        %v301 = vld [vmem:[%s239 + $0x38] sm:$0xff]
        %v302 = vld [vmem:[%s239 + $0x40] sm:$0xff]
        %v303 = vld [vmem:[%s239 + $0x48] sm:$0xff]
        %v304 = vld [vmem:[%s239 + $0x50] sm:$0xff]
        %v305 = vld [vmem:[%s239 + $0x58] sm:$0xff]
        %v306 = vld [vmem:[%s239 + $0x60] sm:$0xff]
        %v307 = vld [vmem:[%s239 + $0x68] sm:$0xff]
        %v308 = vld [vmem:[%s239 + $0x70] sm:$0xff]
        %v309 = vld [vmem:[%s239 + $0x78] sm:$0xff]
        %v310 = vld [vmem:[#allocation2] sm:$0xff]
        %v311 = vld [vmem:[#allocation2 + $0x8] sm:$0xff]
        %v312 = vld [vmem:[#allocation2 + $0x10] sm:$0xff]
        %v313 = vld [vmem:[#allocation2 + $0x18] sm:$0xff]
        %v314 = vld [vmem:[#allocation2 + $0x20] sm:$0xff]
        %v315 = vld [vmem:[#allocation2 + $0x28] sm:$0xff]
        %v316 = vld [vmem:[#allocation2 + $0x30] sm:$0xff]
        %v317 = vld [vmem:[#allocation2 + $0x38] sm:$0xff]
        %v318 = vadd.f32 %v294, %v295
        %319 = vadd.xlane.f32.xlu0 %v318
        %v320 = vpop.xlane.xlu0 %319
        %v321 = vadd.f32 %v296, %v297
        %322 = vadd.xlane.f32.xlu0 %v321
        %v323 = vpop.xlane.xlu0 %322
        %v324 = vadd.f32 %v298, %v299
        %325 = vadd.xlane.f32.xlu0 %v324
        %v326 = vpop.xlane.xlu0 %325
        %v327 = vadd.f32 %v300, %v301
        %328 = vadd.xlane.f32.xlu0 %v327
        %v329 = vpop.xlane.xlu0 %328
        %v330 = vadd.f32 %v302, %v303
        %331 = vadd.xlane.f32.xlu0 %v330
        %v332 = vpop.xlane.xlu0 %331
        %v333 = vadd.f32 %v304, %v305
        %334 = vadd.xlane.f32.xlu0 %v333
        %v335 = vpop.xlane.xlu0 %334
        %v336 = vadd.f32 %v306, %v307
        %337 = vadd.xlane.f32.xlu0 %v336
        %v338 = vpop.xlane.xlu0 %337
        %v339 = vadd.f32 %v308, %v309
        %340 = vadd.xlane.f32.xlu0 %v339
        %v341 = vpop.xlane.xlu0 %340
        %v342 = vadd.f32 %v310, %v320
        %v343 = vadd.f32 %v311, %v323
        %v344 = vadd.f32 %v312, %v326
        %v345 = vadd.f32 %v313, %v329
        %v346 = vadd.f32 %v314, %v332
        %v347 = vadd.f32 %v315, %v335
        %v348 = vadd.f32 %v316, %v338
        %v349 = vadd.f32 %v317, %v341
        %vm350 = vcmask 7168
        %351 = vst.msk [vmem:[#allocation2] sm:$0xff] %vm350, %v342
        %352 = vst.msk [vmem:[#allocation2 + $0x8] sm:$0xff] %vm350, %v343
        %353 = vst.msk [vmem:[#allocation2 + $0x10] sm:$0xff] %vm350, %v344
        %354 = vst.msk [vmem:[#allocation2 + $0x18] sm:$0xff] %vm350, %v345
        %355 = vst.msk [vmem:[#allocation2 + $0x20] sm:$0xff] %vm350, %v346
        %356 = vst.msk [vmem:[#allocation2 + $0x28] sm:$0xff] %vm350, %v347
        %357 = vst.msk [vmem:[#allocation2 + $0x30] sm:$0xff] %vm350, %v348
        %358 = vst.msk [vmem:[#allocation2 + $0x38] sm:$0xff] %vm350, %v349
        // Predicated region
        $region49: #{tpu_custom_call.1} parent=31 // pred_check
          %p359 = pneg %p281
        $region50: #{tpu_custom_call.1} parent=31 // pred_check_branch
          %361 = sbr.rel (%p359) target = $region52
        $region51: #{tpu_custom_call.1} parent=31 // pred_region
          %v362 = vld [vmem:[#allocation2] sm:$0xff]
          %v363 = vld [vmem:[#allocation2 + $0x8] sm:$0xff]
          %v364 = vld [vmem:[#allocation2 + $0x10] sm:$0xff]
          %v365 = vld [vmem:[#allocation2 + $0x18] sm:$0xff]
          %v366 = vld [vmem:[#allocation2 + $0x20] sm:$0xff]
          %v367 = vld [vmem:[#allocation2 + $0x28] sm:$0xff]
          %v368 = vld [vmem:[#allocation2 + $0x30] sm:$0xff]
          %v369 = vld [vmem:[#allocation2 + $0x38] sm:$0xff]
          %v370 = vmul.f32 %v362, 0.00390625
          %v371 = vmul.f32 %v363, 0.00390625
          %v372 = vmul.f32 %v364, 0.00390625
          %v373 = vmul.f32 %v365, 0.00390625
          %v374 = vmul.f32 %v366, 0.00390625
          %v375 = vmul.f32 %v367, 0.00390625
          %v376 = vmul.f32 %v368, 0.00390625
          %v377 = vmul.f32 %v369, 0.00390625
          %v378 = vld [vmem:[#allocation3] sm:$0xff]
          %v379 = vld [vmem:[#allocation3 + $0x8] sm:$0xff]
          %v380 = vld [vmem:[#allocation3 + $0x10] sm:$0xff]
          %v381 = vld [vmem:[#allocation3 + $0x18] sm:$0xff]
          %v382 = vld [vmem:[#allocation3 + $0x20] sm:$0xff]
          %v383 = vld [vmem:[#allocation3 + $0x28] sm:$0xff]
          %v384 = vld [vmem:[#allocation3 + $0x30] sm:$0xff]
          %v385 = vld [vmem:[#allocation3 + $0x38] sm:$0xff]
          %vm386 = vcmask 523264
          %v388 = vsel %vm386, %v378, 0
          %v391 = vsel %vm386, %v379, 0
          %v394 = vsel %vm386, %v380, 0
          %v397 = vsel %vm386, %v381, 0
          %v400 = vsel %vm386, %v382, 0
          %v403 = vsel %vm386, %v383, 0
          %v406 = vsel %vm386, %v384, 0
          %v409 = vsel %vm386, %v385, 0
          %411 = vmatpush.msra.mxu0 0.0
          %412 = vmatpush.msra.mxu0 0.0
          %413 = vmatpush.msra.mxu0 0.0
          %414 = vmatpush.msra.mxu0 0.0
          %415 = vmatpush.msra.mxu0 0.0
          %416 = vmatpush.msra.mxu0 0.0
          %417 = vmatpush.msra.mxu0 0.0
          %418 = vmatpush.msra.mxu0 0.0
          %419 = vmatpush.msra.mxu0 %v377
          %420 = vmatpush.msra.mxu0 %v376
          %421 = vmatpush.msra.mxu0 %v375
          %422 = vmatpush.msra.mxu0 %v374
          %423 = vmatpush.msra.mxu0 %v373
          %424 = vmatpush.msra.mxu0 %v372
          %425 = vmatpush.msra.mxu0 %v371
          %426 = vmatpush.msra.mxu0 %v370
          %427 = vmatmul.f32.gmra.mxu0 %v388
          %v428 = vpop.f32.mrf.mxu0
          %v429 = vadd.f32 0.0, %v428
          %430 = vmatmul.f32.gmra.mxu0 %v391
          %v431 = vpop.f32.mrf.mxu0
          %v432 = vadd.f32 0.0, %v431
          %433 = vmatmul.f32.gmra.mxu0 %v394
          %v434 = vpop.f32.mrf.mxu0
          %v435 = vadd.f32 0.0, %v434
          %436 = vmatmul.f32.gmra.mxu0 %v397
          %v437 = vpop.f32.mrf.mxu0
          %v438 = vadd.f32 0.0, %v437
          %439 = vmatmul.f32.gmra.mxu0 %v400
          %v440 = vpop.f32.mrf.mxu0
          %v441 = vadd.f32 0.0, %v440
          %442 = vmatmul.f32.gmra.mxu0 %v403
          %v443 = vpop.f32.mrf.mxu0
          %v444 = vadd.f32 0.0, %v443
          %445 = vmatmul.f32.gmra.mxu0 %v406
          %v446 = vpop.f32.mrf.mxu0
          %v447 = vadd.f32 0.0, %v446
          %448 = vmatmul.f32.gmra.mxu0 %v409
          %v449 = vpop.f32.mrf.mxu0
          %v450 = vadd.f32 0.0, %v449
          %451 = vdwg.mxu0
          %452 = vst.msk [vmem:[%s275] sm:$0xff] %vm350, %v429
          %453 = vst.msk [vmem:[%s275 + $0x8] sm:$0xff] %vm350, %v432
          %454 = vst.msk [vmem:[%s275 + $0x10] sm:$0xff] %vm350, %v435
          %455 = vst.msk [vmem:[%s275 + $0x18] sm:$0xff] %vm350, %v438
          %456 = vst.msk [vmem:[%s275 + $0x20] sm:$0xff] %vm350, %v441
          %457 = vst.msk [vmem:[%s275 + $0x28] sm:$0xff] %vm350, %v444
          %458 = vst.msk [vmem:[%s275 + $0x30] sm:$0xff] %vm350, %v447
          %459 = vst.msk [vmem:[%s275 + $0x38] sm:$0xff] %vm350, %v450
          %v460 = vld [vmem:[#allocation5] sm:$0xff]
          %v461 = vld [vmem:[#allocation5 + $0x8] sm:$0xff]
          %v462 = vld [vmem:[#allocation5 + $0x10] sm:$0xff]
          %v463 = vld [vmem:[#allocation5 + $0x18] sm:$0xff]
          %vm464 = vcmask 261120
          %v466 = vsel %vm464, %v460, 0
          %v469 = vsel %vm464, %v461, 0
          %v472 = vsel %vm464, %v462, 0
          %v475 = vsel %vm464, %v463, 0
          %477 = vmatpush.msra.mxu0 0.0
          %478 = vmatpush.msra.mxu0 0.0
          %479 = vmatpush.msra.mxu0 0.0
          %480 = vmatpush.msra.mxu0 0.0
          %481 = vmatpush.msra.mxu0 0.0
          %482 = vmatpush.msra.mxu0 0.0
          %483 = vmatpush.msra.mxu0 0.0
          %484 = vmatpush.msra.mxu0 0.0
          %485 = vmatpush.msra.mxu0 0.0
          %486 = vmatpush.msra.mxu0 0.0
          %487 = vmatpush.msra.mxu0 0.0
          %488 = vmatpush.msra.mxu0 0.0
          %489 = vmatpush.msra.mxu0 %v450
          %490 = vmatpush.msra.mxu0 %v447
          %491 = vmatpush.msra.mxu0 %v444
          %492 = vmatpush.msra.mxu0 %v441
          %493 = vmatmul.f32.gmra.mxu0 %v466
          %v494 = vpop.f32.mrf.mxu0
          %v495 = vadd.f32 0.0, %v494
          %496 = vmatmul.f32.gmra.mxu0 %v469
          %v497 = vpop.f32.mrf.mxu0
          %v498 = vadd.f32 0.0, %v497
          %499 = vmatmul.f32.gmra.mxu0 %v472
          %v500 = vpop.f32.mrf.mxu0
          %v501 = vadd.f32 0.0, %v500
          %502 = vmatmul.f32.gmra.mxu0 %v475
          %v503 = vpop.f32.mrf.mxu0
          %v504 = vadd.f32 0.0, %v503
          %505 = vdwg.mxu0
          %506 = vst.msk [vmem:[%s280] sm:$0xff] %vm350, %v495
          %507 = vst.msk [vmem:[%s280 + $0x8] sm:$0xff] %vm350, %v498
          %508 = vst.msk [vmem:[%s280 + $0x10] sm:$0xff] %vm350, %v501
          %509 = vst.msk [vmem:[%s280 + $0x18] sm:$0xff] %vm350, %v504
        $region52: #{tpu_custom_call.1} parent=31 // pred_fallthru
          _
        %p510 = scmp.lt.s32.totalorder %s22, 1
        %s511 = scalar_select %p510, %s22, 1
        %s512 = smul.addr %s511, 8
        %s513 = smul.addr %s512, 8
        %s514 = scalar_lea.vmem %s3, %s513
        %p515 = scmp.lt.s32.totalorder %s22, 1
        %s516 = scalar_select %p515, %s22, 1
        %s517 = smul.addr %s516, 4
        %s518 = smul.addr %s517, 8
        %s519 = scalar_lea.vmem %s4, %s518
        // Predicated region
        $region53: #{tpu_custom_call.1} parent=31 // pred_check
          %p520 = pneg %p118
        $region54: #{tpu_custom_call.1} parent=31 // pred_check_branch
          %522 = sbr.rel (%p520) target = $region56
        $region55: #{tpu_custom_call.1} parent=31 // pred_region
          _
        $region56: #{tpu_custom_call.1} parent=31 // pred_fallthru
          _
        // Predicated region
        $region57: #{tpu_custom_call.1} parent=31 // pred_check
          %p523 = pneg %p144
        $region58: #{tpu_custom_call.1} parent=31 // pred_check_branch
          %525 = sbr.rel (%p523) target = $region60
        $region59: #{tpu_custom_call.1} parent=31 // pred_region
          _
        $region60: #{tpu_custom_call.1} parent=31 // pred_fallthru
          _
      $region32: #{tpu_custom_call.1} parent=5 // pred_fallthru
        _
      %p526 = scmp.le.s32.totalorder 2, %s13
      // Predicated region
      $region61: #{tpu_custom_call.1} parent=5 // pred_check
        %p527 = pneg %p526
      $region62: #{tpu_custom_call.1} parent=5 // pred_check_branch
        %529 = sbr.rel (%p527) target = $region64
      $region63: #{tpu_custom_call.1} parent=5 // pred_region
        %s530 = ssub.s32 %s13, 2
        // Predicated region
        $region65: #{tpu_custom_call.1} parent=63 // pred_check
          %p531 = pneg %p124
        $region66: #{tpu_custom_call.1} parent=63 // pred_check_branch
          %533 = sbr.rel (%p531) target = $region68
        $region67: #{tpu_custom_call.1} parent=63 // pred_region
          %p534 = scmp.lt.s32.totalorder %s24, 1
          %s535 = scalar_select %p534, %s24, 1
          %s536 = smul.addr %s535, 8
          %s537 = smul.addr %s536, 8
          %s538 = scalar_lea.vmem %s3, %s537
        $region68: #{tpu_custom_call.1} parent=63 // pred_fallthru
          _
        // Predicated region
        $region69: #{tpu_custom_call.1} parent=63 // pred_check
          %p539 = pneg %p150
        $region70: #{tpu_custom_call.1} parent=63 // pred_check_branch
          %541 = sbr.rel (%p539) target = $region72
        $region71: #{tpu_custom_call.1} parent=63 // pred_region
          %p542 = scmp.lt.s32.totalorder %s24, 1
          %s543 = scalar_select %p542, %s24, 1
          %s544 = smul.addr %s543, 4
          %s545 = smul.addr %s544, 8
          %s546 = scalar_lea.vmem %s4, %s545
        $region72: #{tpu_custom_call.1} parent=63 // pred_fallthru
          _
      $region64: #{tpu_custom_call.1} parent=5 // pred_fallthru
        _
    $region6: #{tpu_custom_call.1} parent=1 // loop_footer
      %s17 = sadd.s32 1, %s13
    $region7: #{tpu_custom_call.1} parent=1 // loop_footer_branch
      %12 = sbr.rel target = $region3
    $region8: #{tpu_custom_call.1} parent=1 // loop_exit
      _
    %547 = vsyncpa [#allocation4], 1
    %s548 = scalar_lea.sflag [#allocation4], 1
    %549 = vsyncpa %s548, 1
    %550 = vsyncpa [#allocation6], 1

</llo_original>
